<compile_context>
chip_gen: v7x
topology: tpu7x:2x2x1
jax: 0.10.0
libtpu: 0.0.40
codegen_flags: <defaults>
</compile_context>

<pallas_src>
import functools

import jax
import jax.numpy as jnp
import numpy as np
from jax import lax
from jax.experimental import pallas as pl
from jax.experimental.pallas import tpu as pltpu


def _resblock_kernel(x_ref, w1_ref, w2_ref, m_ref, o_ref, *, W):
    """One lane chunk (a whole number of images) per grid step.

    x_ref : (C, L)      input; channels on sublanes, flat (n, h, w) on lanes
    w1_ref: (C, C)      1x1 conv weight, (out, in)
    w2_ref: (9, C, C)   3x3 conv weight, (ky*3+kx, out, in)
    m_ref : (9, 1, L)   f32 zero-padding lane masks per tap (grid-invariant)
    o_ref : (C, L)
    """
    x = x_ref[...]                      # (C, L) f32
    L = x.shape[1]

    # ---- conv1 (1x1, bias=False) + ReLU: one lane-dense MXU dot ----
    h1 = jnp.dot(w1_ref[...], x, preferred_element_type=jnp.float32)
    h1 = jnp.maximum(h1, 0.0)           # (C, L)

    # ---- conv2 (3x3, pad=1, bias=False): 9 rolled+masked taps, 9 accumulating dots ----
    acc = None
    for ky in range(3):
        dy = ky - 1
        for kx in range(3):
            dx = kx - 1
            k = ky * 3 + kx
            # tap[c, p] = h1[c, p + dy*W + dx], zero outside the source image.
            shift = (-(dy * W + dx)) % L
            tap = pltpu.roll(h1, shift, axis=1) if shift else h1
            if dy != 0 or dx != 0:
                tap = tap * m_ref[k]    # (1, L) precomputed mask, sublane-broadcast
            contrib = jnp.dot(w2_ref[k], tap, preferred_element_type=jnp.float32)
            acc = contrib if acc is None else acc + contrib

    # ---- ReLU -> residual add -> final ReLU ----
    out = jnp.maximum(acc, 0.0)
    out = jnp.maximum(out + x, 0.0)
    o_ref[...] = out.astype(o_ref.dtype)

    # TODO(synk): batch_norm=True branch (nn.BatchNorm2d) not implemented; the
    # reference module defaults to batch_norm=False.


def _build_masks(H, W, images_per_block):
    """(9, 1, images_per_block*H*W) f32 masks; grid-invariant, built at trace time."""
    HW = H * W
    q = np.arange(HW, dtype=np.int32)
    hh = q // W
    ww = q % W
    masks = np.ones((9, HW), dtype=np.float32)
    for ky in range(3):
        dy = ky - 1
        for kx in range(3):
            dx = kx - 1
            valid = np.ones((HW,), dtype=bool)
            if dy == -1:
                valid &= hh >= 1
            elif dy == 1:
                valid &= hh < H - 1
            if dx == -1:
                valid &= ww >= 1
            elif dx == 1:
                valid &= ww < W - 1
            masks[ky * 3 + kx] = valid.astype(np.float32)
    masks = np.tile(masks, (1, images_per_block))           # mask is HW-periodic
    return masks.reshape(9, 1, images_per_block * HW)


@jax.jit
def residual_block(x_nchw, w1_oihw, w2_oihw):
    """x_nchw: (N, C, H, W) float32; weights in PyTorch OIHW layout (bias=False)."""
    N, Cin, H, W = x_nchw.shape
    Cout = w1_oihw.shape[0]
    assert Cin == Cout, "residual add requires in_channels == out_channels"
    HW = H * W

    # Fold batch into the lane dim: (N, C, H, W) -> (C, N*H*W).  Tiny transpose.
    x_flat = jnp.transpose(x_nchw, (1, 0, 2, 3)).reshape(Cin, N * HW)
    w1 = w1_oihw[:, :, 0, 0]                                            # (Cout, Cin)
    w2 = jnp.transpose(w2_oihw, (2, 3, 0, 1)).reshape(9, Cout, Cin)      # (9, Cout, Cin)

    # Lane chunking: keep 2 image-aligned chunks when possible so both v7x
    # TensorCores get work; a single chunk otherwise (fewest grid steps on
    # v5e/v6e's single sequential TensorCore).
    G = 2 if (N >= 2 and N % 2 == 0) else 1
    images_per_block = N // G
    L_block = images_per_block * HW

    masks = jnp.asarray(_build_masks(H, W, images_per_block))            # (9, 1, L_block)

    kernel = functools.partial(_resblock_kernel, W=W)
    out_flat = pl.pallas_call(
        kernel,
        out_shape=jax.ShapeDtypeStruct((Cout, N * HW), x_flat.dtype),
        grid=(G,),
        in_specs=[
            pl.BlockSpec((Cin, L_block), lambda b: (0, b)),
            pl.BlockSpec((Cout, Cin), lambda b: (0, 0)),
            pl.BlockSpec((9, Cout, Cin), lambda b: (0, 0, 0)),
            pl.BlockSpec((9, 1, L_block), lambda b: (0, 0, 0)),
        ],
        out_specs=pl.BlockSpec((Cout, L_block), lambda b: (0, b)),
        compiler_params=pltpu.CompilerParams(
            dimension_semantics=("parallel",),
            # Per-step footprint is tens of KiB; an explicit cap keeps us safely
            # inside every generation's scoped VMEM (incl. v7x's 64 MiB).
            vmem_limit_bytes=32 * 1024 * 1024,
        ),
    )(x_flat, w1, w2, masks)

    return jnp.transpose(out_flat.reshape(Cout, N, H, W), (1, 0, 2, 3))


def _reference(x_nchw, w1_oihw, w2_oihw):
    dn = ("NCHW", "OIHW", "NCHW")
    out = lax.conv_general_dilated(
        x_nchw, w1_oihw, (1, 1), "VALID", dimension_numbers=dn
    )
    out = jnp.maximum(out, 0.0)
    out = lax.conv_general_dilated(
        out, w2_oihw, (1, 1), ((1, 1), (1, 1)), dimension_numbers=dn
    )
    out = jnp.maximum(out, 0.0) + x_nchw
    return jnp.maximum(out, 0.0)


if __name__ == "__main__":
    key = jax.random.PRNGKey(0)
    k_x, k_w1, k_w2 = jax.random.split(key, 3)

    N, C, H, W = 2, 4, 16, 16  # in_channels == out_channels == 4
    x = jax.random.normal(k_x, (N, C, H, W), dtype=jnp.float32)
    # Deterministic synthetic weights (PyTorch OIHW layout, bias=False).
    w1 = jax.random.normal(k_w1, (C, C, 1, 1), dtype=jnp.float32) * 0.2
    w2 = jax.random.normal(k_w2, (C, C, 3, 3), dtype=jnp.float32) * 0.1

    out = residual_block(x, w1, w2)
    out = jax.block_until_ready(out)

    ref = _reference(x, w1, w2)
    assert out.shape == (N, C, H, W)
    assert jnp.allclose(out, ref, atol=1e-4, rtol=1e-4), "mismatch vs reference"
    print("KERNEL_OK")
</pallas_src>

<mosaic_0001>
module attributes {stable_mosaic.version = 11 : i64} {
  func.func @_resblock_kernel(%arg0: i32, %arg1: memref<4x256xf32, #tpu.memory_space<vmem>>, %arg2: memref<4x4xf32, #tpu.memory_space<vmem>>, %arg3: memref<9x4x4xf32, #tpu.memory_space<vmem>>, %arg4: memref<9x1x256xf32, #tpu.memory_space<vmem>>, %arg5: memref<4x256xf32, #tpu.memory_space<vmem>>) attributes {dimension_semantics = [#tpu.dimension_semantics<parallel>], iteration_bounds = array<i64: 2>, scalar_prefetch = 0 : i64, scratch_operands = 0 : i64, tpu.core_type = #tpu.core_type<tc>, window_params = [{transform_indices = @transform_0, window_bounds = array<i64: 4, 256>}, {pipeline_mode = #tpu.pipeline_mode<synchronous>, transform_indices = @transform_1, window_bounds = array<i64: 4, 4>}, {pipeline_mode = #tpu.pipeline_mode<synchronous>, transform_indices = @transform_2, window_bounds = array<i64: 9, 4, 4>}, {pipeline_mode = #tpu.pipeline_mode<synchronous>, transform_indices = @transform_3, window_bounds = array<i64: 9, 1, 256>}, {transform_indices = @transform_4, window_bounds = array<i64: 4, 256>}]} {
    %c0 = arith.constant 0 : index
    %c0_0 = arith.constant 0 : index
    %0 = vector.load %arg1[%c0, %c0_0] : memref<4x256xf32, #tpu.memory_space<vmem>>, vector<4x256xf32>
    %c0_1 = arith.constant 0 : index
    %c0_2 = arith.constant 0 : index
    %1 = vector.load %arg2[%c0_1, %c0_2] : memref<4x4xf32, #tpu.memory_space<vmem>>, vector<4x4xf32>
    %cst = arith.constant dense<0.000000e+00> : vector<4x256xf32>
    %2 = tpu.matmul %1, %0, %cst {dimension_numbers = #tpu.dot_dimension_numbers<[1], [0], [0], [1], [0, 0, 1, 1], [], []>} : vector<4x4xf32>, vector<4x256xf32>, vector<4x256xf32> -> vector<4x256xf32>
    %cst_3 = arith.constant 0.000000e+00 : f32
    %3 = vector.broadcast %cst_3 : f32 to vector<4x256xf32>
    %4 = arith.maximumf %2, %3 : vector<4x256xf32>
    %c17_i32 = arith.constant 17 : i32
    %5 = tpu.dynamic_rotate %4 by %c17_i32 dim 1 : vector<4x256xf32>, i32 -> vector<4x256xf32>
    %c0_4 = arith.constant 0 : index
    %c0_5 = arith.constant 0 : index
    %c0_6 = arith.constant 0 : index
    %6 = vector.load %arg4[%c0_4, %c0_5, %c0_6] : memref<9x1x256xf32, #tpu.memory_space<vmem>>, vector<1x1x256xf32>
    %7 = vector.shape_cast %6 : vector<1x1x256xf32> to vector<1x256xf32>
    %8 = vector.broadcast %7 : vector<1x256xf32> to vector<4x256xf32>
    %9 = arith.mulf %5, %8 : vector<4x256xf32>
    %c0_7 = arith.constant 0 : index
    %c0_8 = arith.constant 0 : index
    %c0_9 = arith.constant 0 : index
    %10 = vector.load %arg3[%c0_7, %c0_8, %c0_9] : memref<9x4x4xf32, #tpu.memory_space<vmem>>, vector<1x4x4xf32>
    %11 = vector.shape_cast %10 : vector<1x4x4xf32> to vector<4x4xf32>
    %cst_10 = arith.constant dense<0.000000e+00> : vector<4x256xf32>
    %12 = tpu.matmul %11, %9, %cst_10 {dimension_numbers = #tpu.dot_dimension_numbers<[1], [0], [0], [1], [0, 0, 1, 1], [], []>} : vector<4x4xf32>, vector<4x256xf32>, vector<4x256xf32> -> vector<4x256xf32>
    %c16_i32 = arith.constant 16 : i32
    %13 = tpu.dynamic_rotate %4 by %c16_i32 dim 1 : vector<4x256xf32>, i32 -> vector<4x256xf32>
    %c1 = arith.constant 1 : index
    %c0_11 = arith.constant 0 : index
    %c0_12 = arith.constant 0 : index
    %14 = vector.load %arg4[%c1, %c0_11, %c0_12] : memref<9x1x256xf32, #tpu.memory_space<vmem>>, vector<1x1x256xf32>
    %15 = vector.shape_cast %14 : vector<1x1x256xf32> to vector<1x256xf32>
    %16 = vector.broadcast %15 : vector<1x256xf32> to vector<4x256xf32>
    %17 = arith.mulf %13, %16 : vector<4x256xf32>
    %c1_13 = arith.constant 1 : index
    %c0_14 = arith.constant 0 : index
    %c0_15 = arith.constant 0 : index
    %18 = vector.load %arg3[%c1_13, %c0_14, %c0_15] : memref<9x4x4xf32, #tpu.memory_space<vmem>>, vector<1x4x4xf32>
    %19 = vector.shape_cast %18 : vector<1x4x4xf32> to vector<4x4xf32>
    %cst_16 = arith.constant dense<0.000000e+00> : vector<4x256xf32>
    %20 = tpu.matmul %19, %17, %cst_16 {dimension_numbers = #tpu.dot_dimension_numbers<[1], [0], [0], [1], [0, 0, 1, 1], [], []>} : vector<4x4xf32>, vector<4x256xf32>, vector<4x256xf32> -> vector<4x256xf32>
    %21 = arith.addf %12, %20 : vector<4x256xf32>
    %c15_i32 = arith.constant 15 : i32
    %22 = tpu.dynamic_rotate %4 by %c15_i32 dim 1 : vector<4x256xf32>, i32 -> vector<4x256xf32>
    %c2 = arith.constant 2 : index
    %c0_17 = arith.constant 0 : index
    %c0_18 = arith.constant 0 : index
    %23 = vector.load %arg4[%c2, %c0_17, %c0_18] : memref<9x1x256xf32, #tpu.memory_space<vmem>>, vector<1x1x256xf32>
    %24 = vector.shape_cast %23 : vector<1x1x256xf32> to vector<1x256xf32>
    %25 = vector.broadcast %24 : vector<1x256xf32> to vector<4x256xf32>
    %26 = arith.mulf %22, %25 : vector<4x256xf32>
    %c2_19 = arith.constant 2 : index
    %c0_20 = arith.constant 0 : index
    %c0_21 = arith.constant 0 : index
    %27 = vector.load %arg3[%c2_19, %c0_20, %c0_21] : memref<9x4x4xf32, #tpu.memory_space<vmem>>, vector<1x4x4xf32>
    %28 = vector.shape_cast %27 : vector<1x4x4xf32> to vector<4x4xf32>
    %cst_22 = arith.constant dense<0.000000e+00> : vector<4x256xf32>
    %29 = tpu.matmul %28, %26, %cst_22 {dimension_numbers = #tpu.dot_dimension_numbers<[1], [0], [0], [1], [0, 0, 1, 1], [], []>} : vector<4x4xf32>, vector<4x256xf32>, vector<4x256xf32> -> vector<4x256xf32>
    %30 = arith.addf %21, %29 : vector<4x256xf32>
    %c1_i32 = arith.constant 1 : i32
    %31 = tpu.dynamic_rotate %4 by %c1_i32 dim 1 : vector<4x256xf32>, i32 -> vector<4x256xf32>
    %c3 = arith.constant 3 : index
    %c0_23 = arith.constant 0 : index
    %c0_24 = arith.constant 0 : index
    %32 = vector.load %arg4[%c3, %c0_23, %c0_24] : memref<9x1x256xf32, #tpu.memory_space<vmem>>, vector<1x1x256xf32>
    %33 = vector.shape_cast %32 : vector<1x1x256xf32> to vector<1x256xf32>
    %34 = vector.broadcast %33 : vector<1x256xf32> to vector<4x256xf32>
    %35 = arith.mulf %31, %34 : vector<4x256xf32>
    %c3_25 = arith.constant 3 : index
    %c0_26 = arith.constant 0 : index
    %c0_27 = arith.constant 0 : index
    %36 = vector.load %arg3[%c3_25, %c0_26, %c0_27] : memref<9x4x4xf32, #tpu.memory_space<vmem>>, vector<1x4x4xf32>
    %37 = vector.shape_cast %36 : vector<1x4x4xf32> to vector<4x4xf32>
    %cst_28 = arith.constant dense<0.000000e+00> : vector<4x256xf32>
    %38 = tpu.matmul %37, %35, %cst_28 {dimension_numbers = #tpu.dot_dimension_numbers<[1], [0], [0], [1], [0, 0, 1, 1], [], []>} : vector<4x4xf32>, vector<4x256xf32>, vector<4x256xf32> -> vector<4x256xf32>
    %39 = arith.addf %30, %38 : vector<4x256xf32>
    %c4 = arith.constant 4 : index
    %c0_29 = arith.constant 0 : index
    %c0_30 = arith.constant 0 : index
    %40 = vector.load %arg3[%c4, %c0_29, %c0_30] : memref<9x4x4xf32, #tpu.memory_space<vmem>>, vector<1x4x4xf32>
    %41 = vector.shape_cast %40 : vector<1x4x4xf32> to vector<4x4xf32>
    %cst_31 = arith.constant dense<0.000000e+00> : vector<4x256xf32>
    %42 = tpu.matmul %41, %4, %cst_31 {dimension_numbers = #tpu.dot_dimension_numbers<[1], [0], [0], [1], [0, 0, 1, 1], [], []>} : vector<4x4xf32>, vector<4x256xf32>, vector<4x256xf32> -> vector<4x256xf32>
    %43 = arith.addf %39, %42 : vector<4x256xf32>
    %c255_i32 = arith.constant 255 : i32
    %44 = tpu.dynamic_rotate %4 by %c255_i32 dim 1 : vector<4x256xf32>, i32 -> vector<4x256xf32>
    %c5 = arith.constant 5 : index
    %c0_32 = arith.constant 0 : index
    %c0_33 = arith.constant 0 : index
    %45 = vector.load %arg4[%c5, %c0_32, %c0_33] : memref<9x1x256xf32, #tpu.memory_space<vmem>>, vector<1x1x256xf32>
    %46 = vector.shape_cast %45 : vector<1x1x256xf32> to vector<1x256xf32>
    %47 = vector.broadcast %46 : vector<1x256xf32> to vector<4x256xf32>
    %48 = arith.mulf %44, %47 : vector<4x256xf32>
    %c5_34 = arith.constant 5 : index
    %c0_35 = arith.constant 0 : index
    %c0_36 = arith.constant 0 : index
    %49 = vector.load %arg3[%c5_34, %c0_35, %c0_36] : memref<9x4x4xf32, #tpu.memory_space<vmem>>, vector<1x4x4xf32>
    %50 = vector.shape_cast %49 : vector<1x4x4xf32> to vector<4x4xf32>
    %cst_37 = arith.constant dense<0.000000e+00> : vector<4x256xf32>
    %51 = tpu.matmul %50, %48, %cst_37 {dimension_numbers = #tpu.dot_dimension_numbers<[1], [0], [0], [1], [0, 0, 1, 1], [], []>} : vector<4x4xf32>, vector<4x256xf32>, vector<4x256xf32> -> vector<4x256xf32>
    %52 = arith.addf %43, %51 : vector<4x256xf32>
    %c241_i32 = arith.constant 241 : i32
    %53 = tpu.dynamic_rotate %4 by %c241_i32 dim 1 : vector<4x256xf32>, i32 -> vector<4x256xf32>
    %c6 = arith.constant 6 : index
    %c0_38 = arith.constant 0 : index
    %c0_39 = arith.constant 0 : index
    %54 = vector.load %arg4[%c6, %c0_38, %c0_39] : memref<9x1x256xf32, #tpu.memory_space<vmem>>, vector<1x1x256xf32>
    %55 = vector.shape_cast %54 : vector<1x1x256xf32> to vector<1x256xf32>
    %56 = vector.broadcast %55 : vector<1x256xf32> to vector<4x256xf32>
    %57 = arith.mulf %53, %56 : vector<4x256xf32>
    %c6_40 = arith.constant 6 : index
    %c0_41 = arith.constant 0 : index
    %c0_42 = arith.constant 0 : index
    %58 = vector.load %arg3[%c6_40, %c0_41, %c0_42] : memref<9x4x4xf32, #tpu.memory_space<vmem>>, vector<1x4x4xf32>
    %59 = vector.shape_cast %58 : vector<1x4x4xf32> to vector<4x4xf32>
    %cst_43 = arith.constant dense<0.000000e+00> : vector<4x256xf32>
    %60 = tpu.matmul %59, %57, %cst_43 {dimension_numbers = #tpu.dot_dimension_numbers<[1], [0], [0], [1], [0, 0, 1, 1], [], []>} : vector<4x4xf32>, vector<4x256xf32>, vector<4x256xf32> -> vector<4x256xf32>
    %61 = arith.addf %52, %60 : vector<4x256xf32>
    %c240_i32 = arith.constant 240 : i32
    %62 = tpu.dynamic_rotate %4 by %c240_i32 dim 1 : vector<4x256xf32>, i32 -> vector<4x256xf32>
    %c7 = arith.constant 7 : index
    %c0_44 = arith.constant 0 : index
    %c0_45 = arith.constant 0 : index
    %63 = vector.load %arg4[%c7, %c0_44, %c0_45] : memref<9x1x256xf32, #tpu.memory_space<vmem>>, vector<1x1x256xf32>
    %64 = vector.shape_cast %63 : vector<1x1x256xf32> to vector<1x256xf32>
    %65 = vector.broadcast %64 : vector<1x256xf32> to vector<4x256xf32>
    %66 = arith.mulf %62, %65 : vector<4x256xf32>
    %c7_46 = arith.constant 7 : index
    %c0_47 = arith.constant 0 : index
    %c0_48 = arith.constant 0 : index
    %67 = vector.load %arg3[%c7_46, %c0_47, %c0_48] : memref<9x4x4xf32, #tpu.memory_space<vmem>>, vector<1x4x4xf32>
    %68 = vector.shape_cast %67 : vector<1x4x4xf32> to vector<4x4xf32>
    %cst_49 = arith.constant dense<0.000000e+00> : vector<4x256xf32>
    %69 = tpu.matmul %68, %66, %cst_49 {dimension_numbers = #tpu.dot_dimension_numbers<[1], [0], [0], [1], [0, 0, 1, 1], [], []>} : vector<4x4xf32>, vector<4x256xf32>, vector<4x256xf32> -> vector<4x256xf32>
    %70 = arith.addf %61, %69 : vector<4x256xf32>
    %c239_i32 = arith.constant 239 : i32
    %71 = tpu.dynamic_rotate %4 by %c239_i32 dim 1 : vector<4x256xf32>, i32 -> vector<4x256xf32>
    %c8 = arith.constant 8 : index
    %c0_50 = arith.constant 0 : index
    %c0_51 = arith.constant 0 : index
    %72 = vector.load %arg4[%c8, %c0_50, %c0_51] : memref<9x1x256xf32, #tpu.memory_space<vmem>>, vector<1x1x256xf32>
    %73 = vector.shape_cast %72 : vector<1x1x256xf32> to vector<1x256xf32>
    %74 = vector.broadcast %73 : vector<1x256xf32> to vector<4x256xf32>
    %75 = arith.mulf %71, %74 : vector<4x256xf32>
    %c8_52 = arith.constant 8 : index
    %c0_53 = arith.constant 0 : index
    %c0_54 = arith.constant 0 : index
    %76 = vector.load %arg3[%c8_52, %c0_53, %c0_54] : memref<9x4x4xf32, #tpu.memory_space<vmem>>, vector<1x4x4xf32>
    %77 = vector.shape_cast %76 : vector<1x4x4xf32> to vector<4x4xf32>
    %cst_55 = arith.constant dense<0.000000e+00> : vector<4x256xf32>
    %78 = tpu.matmul %77, %75, %cst_55 {dimension_numbers = #tpu.dot_dimension_numbers<[1], [0], [0], [1], [0, 0, 1, 1], [], []>} : vector<4x4xf32>, vector<4x256xf32>, vector<4x256xf32> -> vector<4x256xf32>
    %79 = arith.addf %70, %78 : vector<4x256xf32>
    %cst_56 = arith.constant 0.000000e+00 : f32
    %80 = vector.broadcast %cst_56 : f32 to vector<4x256xf32>
    %81 = arith.maximumf %79, %80 : vector<4x256xf32>
    %82 = arith.addf %81, %0 : vector<4x256xf32>
    %cst_57 = arith.constant 0.000000e+00 : f32
    %83 = vector.broadcast %cst_57 : f32 to vector<4x256xf32>
    %84 = arith.maximumf %82, %83 : vector<4x256xf32>
    %c0_58 = arith.constant 0 : index
    %c0_59 = arith.constant 0 : index
    %85 = vector.load %arg5[%c0_58, %c0_59] : memref<4x256xf32, #tpu.memory_space<vmem>>, vector<4x256xf32>
    tpu.vector_store %arg5[%c0_58, %c0_59], %84 {strides = array<i32>} : memref<4x256xf32, #tpu.memory_space<vmem>>, vector<4x256xf32>,
    return
  }
  func.func @transform_0(%arg0: i32) -> (i32, i32) {
    %c0_i32 = arith.constant 0 : i32
    %c0_i32_0 = arith.constant 0 : i32
    return %c0_i32, %arg0 : i32, i32
  }
  func.func @transform_1(%arg0: i32) -> (i32, i32) {
    %c0_i32 = arith.constant 0 : i32
    %c0_i32_0 = arith.constant 0 : i32
    %c0_i32_1 = arith.constant 0 : i32
    return %c0_i32, %c0_i32_0 : i32, i32
  }
  func.func @transform_2(%arg0: i32) -> (i32, i32, i32) {
    %c0_i32 = arith.constant 0 : i32
    %c0_i32_0 = arith.constant 0 : i32
    %c0_i32_1 = arith.constant 0 : i32
    %c0_i32_2 = arith.constant 0 : i32
    return %c0_i32, %c0_i32_0, %c0_i32_1 : i32, i32, i32
  }
  func.func @transform_3(%arg0: i32) -> (i32, i32, i32) {
    %c0_i32 = arith.constant 0 : i32
    %c0_i32_0 = arith.constant 0 : i32
    %c0_i32_1 = arith.constant 0 : i32
    %c0_i32_2 = arith.constant 0 : i32
    return %c0_i32, %c0_i32_0, %c0_i32_1 : i32, i32, i32
  }
  func.func @transform_4(%arg0: i32) -> (i32, i32) {
    %c0_i32 = arith.constant 0 : i32
    %c0_i32_0 = arith.constant 0 : i32
    return %c0_i32, %arg0 : i32, i32
  }
}

</mosaic_0001>

<llo_original>
// kernel: residual_block.1
$region0: #{residual_block.1}
  #allocation0 [shape = 'u32[]', space=smem, size = 0x4, offset = 0x4, fixed_abs, tag = 'smem constant byte address 0x4 - core index']
  #allocation1 [shape = 'u32[144,128]{1,0:T(1,128)}', space=vmem, size = 0x12000, scoped, tag = 'internal scratch']
  %s0 = inlined_call_operand.vmem [shape: f32[4,512], index: 0, kind: input, shape index: {}]
  %s1 = inlined_call_operand.vmem [shape: f32[4,4], index: 1, kind: input, shape index: {}]
  %s2 = inlined_call_operand.vmem [shape: f32[9,4,4], index: 2, kind: input, shape index: {}]
  %s3 = inlined_call_operand.vmem [shape: f32[9,1,256], index: 3, kind: input, shape index: {}]
  %s4 = inlined_call_operand.vmem [shape: f32[4,512], index: 4, kind: output, shape index: {}]
  %s5 = sld [smem:[#allocation0]]
  $region49: #{residual_block.1} parent=0
    _
  %s7 = ssub.s32 1, %s5
  %s8 = scalar_select 0, %s7, %s5
  loop: start=0, step=1, limit=4
  $region2: #{residual_block.1} parent=0 // loop_pre_header
    _
  $region3: #{residual_block.1} parent=0 // loop_header
    %s10 = sphi 0, %s14
    %p11 = scmp.ge.s32.totalorder %s10, 4
    %s20 = sphi 0, %s22
    %s23 = sphi 0, %s20
    %s24 = sphi 0, %s23
    %s40 = sphi 0, %s24
    %s44 = sphi 0, %s44
    %s46 = sphi 0, %s44
    %s47 = sphi 0, %s46
    %s61 = sphi 0, %s47
    %s65 = sphi 0, %s65
    %s67 = sphi 0, %s65
    %s68 = sphi 0, %s67
    %s82 = sphi 0, %s68
    %s86 = sphi 0, %s86
    %s88 = sphi 0, %s86
    %s89 = sphi 0, %s88
    %s103 = sphi 0, %s89
    %s109 = sphi 0, %s111
    %s112 = sphi 0, %s109
    %s113 = sphi 0, %s112
    %s129 = sphi 0, %s113
  $region4: #{residual_block.1} parent=0 // loop_header_branch
    %13 = sbr.rel (%p11) target = $region8
  $region5: #{residual_block.1} parent=0 // loop_body
    %s15 = ssub.s32 %s10, 1
    %s16 = ssub.s32 %s10, 2
    %s17 = sadd.s32 %s10, 1
    %s18 = ssub.s32 %s10, %s17
    %p19 = scmp.eq.s32.totalorder %s18, 0
    %s21 = sadd.s32 %s20, 1
    %s22 = scalar_select %p19, %s20, %s21
    %p25 = pneg %p19
    %p26 = scmp.eq.s32.totalorder %s10, 1
    %p27 = por %p25, %p26
    %p28 = scmp.ne.s32.totalorder %s20, %s23
    %p29 = scmp.eq.s32.totalorder %s10, 0
    %p30 = por %p28, %p29
    %p31 = scmp.ne.s32.totalorder %s20, %s23
    %p32 = scmp.eq.s32.totalorder %s15, 1
    %p33 = por %p31, %p32
    %p34 = scmp.ne.s32.totalorder %s23, %s24
    %p35 = scmp.eq.s32.totalorder %s15, 0
    %p36 = por %p34, %p35
    %p37 = scmp.ne.s32.totalorder %s23, %s24
    %p38 = scmp.eq.s32.totalorder %s16, 1
    %p39 = por %p37, %p38
    %p41 = scmp.ne.s32.totalorder %s24, %s40
    %p42 = scmp.eq.s32.totalorder %s16, 0
    %p43 = por %p41, %p42
    %s45 = sadd.s32 %s44, 1
    %p48 = scmp.eq.s32.totalorder %s10, 1
    %p49 = scmp.ne.s32.totalorder %s44, %s46
    %p50 = scmp.eq.s32.totalorder %s10, 0
    %p51 = por %p49, %p50
    %p52 = scmp.ne.s32.totalorder %s44, %s46
    %p53 = scmp.eq.s32.totalorder %s15, 1
    %p54 = por %p52, %p53
    %p55 = scmp.ne.s32.totalorder %s46, %s47
    %p56 = scmp.eq.s32.totalorder %s15, 0
    %p57 = por %p55, %p56
    %p58 = scmp.ne.s32.totalorder %s46, %s47
    %p59 = scmp.eq.s32.totalorder %s16, 1
    %p60 = por %p58, %p59
    %p62 = scmp.ne.s32.totalorder %s47, %s61
    %p63 = scmp.eq.s32.totalorder %s16, 0
    %p64 = por %p62, %p63
    %s66 = sadd.s32 %s65, 1
    %p69 = scmp.eq.s32.totalorder %s10, 1
    %p70 = scmp.ne.s32.totalorder %s65, %s67
    %p71 = scmp.eq.s32.totalorder %s10, 0
    %p72 = por %p70, %p71
    %p73 = scmp.ne.s32.totalorder %s65, %s67
    %p74 = scmp.eq.s32.totalorder %s15, 1
    %p75 = por %p73, %p74
    %p76 = scmp.ne.s32.totalorder %s67, %s68
    %p77 = scmp.eq.s32.totalorder %s15, 0
    %p78 = por %p76, %p77
    %p79 = scmp.ne.s32.totalorder %s67, %s68
    %p80 = scmp.eq.s32.totalorder %s16, 1
    %p81 = por %p79, %p80
    %p83 = scmp.ne.s32.totalorder %s68, %s82
    %p84 = scmp.eq.s32.totalorder %s16, 0
    %p85 = por %p83, %p84
    %s87 = sadd.s32 %s86, 1
    %p90 = scmp.eq.s32.totalorder %s10, 1
    %p91 = scmp.ne.s32.totalorder %s86, %s88
    %p92 = scmp.eq.s32.totalorder %s10, 0
    %p93 = por %p91, %p92
    %p94 = scmp.ne.s32.totalorder %s86, %s88
    %p95 = scmp.eq.s32.totalorder %s15, 1
    %p96 = por %p94, %p95
    %p97 = scmp.ne.s32.totalorder %s88, %s89
    %p98 = scmp.eq.s32.totalorder %s15, 0
    %p99 = por %p97, %p98
    %p100 = scmp.ne.s32.totalorder %s88, %s89
    %p101 = scmp.eq.s32.totalorder %s16, 1
    %p102 = por %p100, %p101
    %p104 = scmp.ne.s32.totalorder %s89, %s103
    %p105 = scmp.eq.s32.totalorder %s16, 0
    %p106 = por %p104, %p105
    %s107 = ssub.s32 %s10, %s17
    %p108 = scmp.eq.s32.totalorder %s107, 0
    %s110 = sadd.s32 %s109, 1
    %s111 = scalar_select %p108, %s109, %s110
    %p114 = pneg %p108
    %p115 = scmp.eq.s32.totalorder %s10, 1
    %p116 = por %p114, %p115
    %p117 = scmp.ne.s32.totalorder %s109, %s112
    %p118 = scmp.eq.s32.totalorder %s10, 0
    %p119 = por %p117, %p118
    %p120 = scmp.ne.s32.totalorder %s109, %s112
    %p121 = scmp.eq.s32.totalorder %s15, 1
    %p122 = por %p120, %p121
    %p123 = scmp.ne.s32.totalorder %s112, %s113
    %p124 = scmp.eq.s32.totalorder %s15, 0
    %p125 = por %p123, %p124
    %p126 = scmp.ne.s32.totalorder %s112, %s113
    %p127 = scmp.eq.s32.totalorder %s16, 1
    %p128 = por %p126, %p127
    %p130 = scmp.ne.s32.totalorder %s113, %s129
    %p131 = scmp.eq.s32.totalorder %s16, 0
    %p132 = por %p130, %p131
    %p133 = scmp.le.s32.totalorder 1, %s10
    %p134 = scmp.lt.s32.totalorder %s10, 3
    %p135 = pnand %p133, %p134
    %p136 = pneg %p135
    // Predicated region
    $region9: #{residual_block.1} parent=5 // pred_check
      _
    $region10: #{residual_block.1} parent=5 // pred_check_branch
      %138 = sbr.rel (%p135) target = $region12
    $region11: #{residual_block.1} parent=5 // pred_region
      %s139 = ssub.s32 %s10, 1
      // Predicated region
      $region13: #{residual_block.1} parent=11 // pred_check
        %p140 = pneg %p57
      $region14: #{residual_block.1} parent=11 // pred_check_branch
        %142 = sbr.rel (%p140) target = $region16
      $region15: #{residual_block.1} parent=11 // pred_region
        _
      $region16: #{residual_block.1} parent=11 // pred_fallthru
        _
      // Predicated region
      $region17: #{residual_block.1} parent=11 // pred_check
        %p143 = pneg %p78
      $region18: #{residual_block.1} parent=11 // pred_check_branch
        %145 = sbr.rel (%p143) target = $region20
      $region19: #{residual_block.1} parent=11 // pred_region
        _
      $region20: #{residual_block.1} parent=11 // pred_fallthru
        _
      // Predicated region
      $region21: #{residual_block.1} parent=11 // pred_check
        %p146 = pneg %p99
      $region22: #{residual_block.1} parent=11 // pred_check_branch
        %148 = sbr.rel (%p146) target = $region24
      $region23: #{residual_block.1} parent=11 // pred_region
        _
      $region24: #{residual_block.1} parent=11 // pred_fallthru
        _
    $region12: #{residual_block.1} parent=5 // pred_fallthru
      _
    %p149 = scmp.lt.s32.totalorder %s10, 2
    // Predicated region
    $region25: #{residual_block.1} parent=5 // pred_check
      %p150 = pneg %p149
    $region26: #{residual_block.1} parent=5 // pred_check_branch
      %152 = sbr.rel (%p150) target = $region28
    $region27: #{residual_block.1} parent=5 // pred_region
      // Predicated region
      $region29: #{residual_block.1} parent=27 // pred_check
        %p153 = pneg %p30
      $region30: #{residual_block.1} parent=27 // pred_check_branch
        %155 = sbr.rel (%p153) target = $region32
      $region31: #{residual_block.1} parent=27 // pred_region
        %s156 = smul.u32 2, %s10
        %p157 = scmp.lt.s32.totalorder %s156, 3
        %s158 = scalar_select %p157, %s156, 3
        %s159 = smul.addr %s158, 4
        %s160 = scalar_lea.vmem %s0, %s159
        %s161 = smul.u32 2, %s10
      $region32: #{residual_block.1} parent=27 // pred_fallthru
        _
    $region28: #{residual_block.1} parent=5 // pred_fallthru
      _
    %p162 = scmp.le.s32.totalorder 1, %s10
    %p163 = scmp.lt.s32.totalorder %s10, 3
    %p164 = pnand %p162, %p163
    %p165 = pneg %p164
    // Predicated region
    $region33: #{residual_block.1} parent=5 // pred_check
      _
    $region34: #{residual_block.1} parent=5 // pred_check_branch
      %167 = sbr.rel (%p164) target = $region36
    $region35: #{residual_block.1} parent=5 // pred_region
      %s168 = ssub.s32 %s10, 1
      %s169 = smul.u32 2, %s15
      %p170 = scmp.lt.s32.totalorder %s169, 3
      %s171 = scalar_select %p170, %s169, 3
      %s172 = smul.addr %s171, 4
      %s173 = scalar_lea.vmem %s0, %s172
      %p174 = pneg %p36
      %p175 = pneg %p33
      %p176 = pneg %p57
      %p177 = pneg %p54
      %p178 = pneg %p78
      %p179 = pneg %p75
      %p180 = pneg %p99
      %p181 = pneg %p96
      %p182 = pneg %p125
      %p183 = pneg %p122
      %s184 = smul.u32 2, %s15
      %p185 = scmp.lt.s32.totalorder %s184, 3
      %s186 = scalar_select %p185, %s184, 3
      %s187 = smul.addr %s186, 4
      %s188 = scalar_lea.vmem %s4, %s187
      %s189 = smul.u32 2, %s15
      %p190 = scmp.lt.s32.totalorder %s189, 3
      %s191 = scalar_select %p190, %s189, 3
      %s192 = smul.addr %s191, 4
      %s193 = scalar_lea.vmem %s0, %s192
      %s194 = smul.u32 2, %s15
      %s195 = smul.u32 2, %s15
      %p196 = scmp.lt.s32.totalorder %s195, 3
      %s197 = scalar_select %p196, %s195, 3
      %s198 = smul.addr %s197, 4
      %s199 = scalar_lea.vmem %s4, %s198
      %s200 = smul.u32 2, %s15
      %v201 = vld [vmem:[%s193] sm:$0xff]
      %v202 = vld [vmem:[%s1] sm:$0xf]
      %v204 = vcombine.high %v201, %v201
      %vm205 = vcmask 31744
      %v207 = vsel %vm205, %v202, 0
      %vm209 = vcmask 1043456
      %v210 = vsel %vm209, %v201, 0
      %v212 = vsel %vm209, %v204, 0
      %214 = vmatprep.subr.mxu0 %v212
      %215 = vmatpush1.msra.mxu0 %v210
      %216 = vmatprep.subr.mxu0 0.0
      %217 = vmatpush1.msra.mxu0 0.0
      %218 = vmatprep.subr.mxu0 0.0
      %219 = vmatpush1.msra.mxu0 0.0
      %220 = vmatprep.subr.mxu0 0.0
      %221 = vmatpush1.msra.mxu0 0.0
      %222 = vmatprep.subr.mxu0 0.0
      %223 = vmatpush1.msra.mxu0 0.0
      %224 = vmatprep.subr.mxu0 0.0
      %225 = vmatpush1.msra.mxu0 0.0
      %226 = vmatprep.subr.mxu0 0.0
      %227 = vmatpush1.msra.mxu0 0.0
      %228 = vmatprep.subr.mxu0 0.0
      %229 = vmatpush1.msra.mxu0 0.0
      %230 = vmatprep.subr.mxu0 0.0
      %231 = vmatpush1.msra.mxu0 0.0
      %232 = vmatprep.subr.mxu0 0.0
      %233 = vmatpush1.msra.mxu0 0.0
      %234 = vmatprep.subr.mxu0 0.0
      %235 = vmatpush1.msra.mxu0 0.0
      %236 = vmatprep.subr.mxu0 0.0
      %237 = vmatpush1.msra.mxu0 0.0
      %238 = vmatprep.subr.mxu0 0.0
      %239 = vmatpush1.msra.mxu0 0.0
      %240 = vmatprep.subr.mxu0 0.0
      %241 = vmatpush1.msra.mxu0 0.0
      %242 = vmatprep.subr.mxu0 0.0
      %243 = vmatpush1.msra.mxu0 0.0
      %244 = vmatprep.subr.mxu0 0.0
      %245 = vmatpush1.msra.mxu0 0.0
      %246 = vmatprep.subr.mxu0 0.0
      %247 = vmatpush1.msra.mxu0 0.0
      %248 = vmatprep.subr.mxu0 0.0
      %249 = vmatpush1.msra.mxu0 0.0
      %250 = vmatprep.subr.mxu0 0.0
      %251 = vmatpush1.msra.mxu0 0.0
      %252 = vmatprep.subr.mxu0 0.0
      %253 = vmatpush1.msra.mxu0 0.0
      %254 = vmatprep.subr.mxu0 0.0
      %255 = vmatpush1.msra.mxu0 0.0
      %256 = vmatprep.subr.mxu0 0.0
      %257 = vmatpush1.msra.mxu0 0.0
      %258 = vmatprep.subr.mxu0 0.0
      %259 = vmatpush1.msra.mxu0 0.0
      %260 = vmatprep.subr.mxu0 0.0
      %261 = vmatpush1.msra.mxu0 0.0
      %262 = vmatprep.subr.mxu0 0.0
      %263 = vmatpush1.msra.mxu0 0.0
      %264 = vmatprep.subr.mxu0 0.0
      %265 = vmatpush1.msra.mxu0 0.0
      %266 = vmatprep.subr.mxu0 0.0
      %267 = vmatpush1.msra.mxu0 0.0
      %268 = vmatprep.subr.mxu0 0.0
      %269 = vmatpush1.msra.mxu0 0.0
      %270 = vmatprep.subr.mxu0 0.0
      %271 = vmatpush1.msra.mxu0 0.0
      %272 = vmatprep.subr.mxu0 0.0
      %273 = vmatpush1.msra.mxu0 0.0
      %274 = vmatprep.subr.mxu0 0.0
      %275 = vmatpush1.msra.mxu0 0.0
      %276 = vmatprep.subr.mxu0 0.0
      %277 = vmatpush1.msra.mxu0 0.0
      %278 = vmatprep.mubr.f32.mxu0 0.0
      %279 = vmatmul.mubr.f32.gmra.mrb[0].mxu0 %v207
      %v280 = vpop.f32.mrb[0].mxu0
      %v281 = vadd.f32 0.0, %v280
      %v282 = vpop.f32.mrb[0].mxu0
      %v283 = vadd.f32 0.0, %v282
      %284 = vdwg.mxu0
      %v285 = vmax.f32 %v281, 0.0
      %v286 = vmax.f32 %v283, 0.0
      %287 = vrot.lane.b32.xlu0 %v285, 17
      %v288 = vpop.permute.xlu0 %287
      %289 = vrot.lane.b32.xlu0 %v286, 17
      %v290 = vpop.permute.xlu0 %289
      %v291 = vlaneseq
      %v292 = vand.u32 %v291, 127
      %vm293 = vcmp.lt.s32.totalorder %v292, 17
      %v294 = vsel %vm293, %v288, %v290
      %v295 = vsel %vm293, %v290, %v288
      %v296 = vld [vmem:[%s3] sm:$0x3]
      %v298 = vlaneseq
      %v299 = vshrl.u32 %v298, 7
      %v300 = vsub.s32 0, %v299
      %v301 = vrot.slane %v296, %v300
      %v302 = vlaneseq
      %v303 = vshrl.u32 %v302, 7
      %v304 = vsub.s32 1, %v303
      %v305 = vrot.slane %v296, %v304
      %v308 = vmul.f32 %v295, %v301
      %v309 = vmul.f32 %v294, %v305
      %v310 = vld [vmem:[%s2] sm:$0xf]
      %311 = vrot.lane.b32.xlu0 %v285, 16
      %v312 = vpop.permute.xlu0 %311
      %313 = vrot.lane.b32.xlu0 %v286, 16
      %v314 = vpop.permute.xlu0 %313
      %vm315 = vcmp.lt.s32.totalorder %v292, 16
      %v316 = vsel %vm315, %v312, %v314
      %v317 = vsel %vm315, %v314, %v312
      %s318 = scalar_lea.vmem %s3, 2
      %v319 = vld [vmem:[%s318] sm:$0x3]
      %v321 = vlaneseq
      %v322 = vshrl.u32 %v321, 7
      %v323 = vsub.s32 0, %v322
      %v324 = vrot.slane %v319, %v323
      %v325 = vlaneseq
      %v326 = vshrl.u32 %v325, 7
      %v327 = vsub.s32 1, %v326
      %v328 = vrot.slane %v319, %v327
      %v331 = vmul.f32 %v317, %v324
      %v332 = vmul.f32 %v316, %v328
      %s333 = scalar_lea.vmem %s2, 4
      %v334 = vld [vmem:[%s333] sm:$0xf]
      %v336 = vsel %vm205, %v334, 0
      %v339 = vsel %vm209, %v331, 0
      %v342 = vsel %vm209, %v332, 0
      %344 = vmatprep.subr.mxu0 %v342
      %345 = vmatpush1.msra.mxu0 %v339
      %346 = vmatprep.subr.mxu0 0.0
      %347 = vmatpush1.msra.mxu0 0.0
      %348 = vmatprep.subr.mxu0 0.0
      %349 = vmatpush1.msra.mxu0 0.0
      %350 = vmatprep.subr.mxu0 0.0
      %351 = vmatpush1.msra.mxu0 0.0
      %352 = vmatprep.subr.mxu0 0.0
      %353 = vmatpush1.msra.mxu0 0.0
      %354 = vmatprep.subr.mxu0 0.0
      %355 = vmatpush1.msra.mxu0 0.0
      %356 = vmatprep.subr.mxu0 0.0
      %357 = vmatpush1.msra.mxu0 0.0
      %358 = vmatprep.subr.mxu0 0.0
      %359 = vmatpush1.msra.mxu0 0.0
      %360 = vmatprep.subr.mxu0 0.0
      %361 = vmatpush1.msra.mxu0 0.0
      %362 = vmatprep.subr.mxu0 0.0
      %363 = vmatpush1.msra.mxu0 0.0
      %364 = vmatprep.subr.mxu0 0.0
      %365 = vmatpush1.msra.mxu0 0.0
      %366 = vmatprep.subr.mxu0 0.0
      %367 = vmatpush1.msra.mxu0 0.0
      %368 = vmatprep.subr.mxu0 0.0
      %369 = vmatpush1.msra.mxu0 0.0
      %370 = vmatprep.subr.mxu0 0.0
      %371 = vmatpush1.msra.mxu0 0.0
      %372 = vmatprep.subr.mxu0 0.0
      %373 = vmatpush1.msra.mxu0 0.0
      %374 = vmatprep.subr.mxu0 0.0
      %375 = vmatpush1.msra.mxu0 0.0
      %376 = vmatprep.subr.mxu0 0.0
      %377 = vmatpush1.msra.mxu0 0.0
      %378 = vmatprep.subr.mxu0 0.0
      %379 = vmatpush1.msra.mxu0 0.0
      %380 = vmatprep.subr.mxu0 0.0
      %381 = vmatpush1.msra.mxu0 0.0
      %382 = vmatprep.subr.mxu0 0.0
      %383 = vmatpush1.msra.mxu0 0.0
      %384 = vmatprep.subr.mxu0 0.0
      %385 = vmatpush1.msra.mxu0 0.0
      %386 = vmatprep.subr.mxu0 0.0
      %387 = vmatpush1.msra.mxu0 0.0
      %388 = vmatprep.subr.mxu0 0.0
      %389 = vmatpush1.msra.mxu0 0.0
      %390 = vmatprep.subr.mxu0 0.0
      %391 = vmatpush1.msra.mxu0 0.0
      %392 = vmatprep.subr.mxu0 0.0
      %393 = vmatpush1.msra.mxu0 0.0
      %394 = vmatprep.subr.mxu0 0.0
      %395 = vmatpush1.msra.mxu0 0.0
      %396 = vmatprep.subr.mxu0 0.0
      %397 = vmatpush1.msra.mxu0 0.0
      %398 = vmatprep.subr.mxu0 0.0
      %399 = vmatpush1.msra.mxu0 0.0
      %400 = vmatprep.subr.mxu0 0.0
      %401 = vmatpush1.msra.mxu0 0.0
      %402 = vmatprep.subr.mxu0 0.0
      %403 = vmatpush1.msra.mxu0 0.0
      %404 = vmatprep.subr.mxu0 0.0
      %405 = vmatpush1.msra.mxu0 0.0
      %406 = vmatprep.subr.mxu0 0.0
      %407 = vmatpush1.msra.mxu0 0.0
      %408 = vmatprep.mubr.f32.mxu0 0.0
      %409 = vmatmul.mubr.f32.gmra.mrb[0].mxu0 %v336
      %v410 = vpop.f32.mrb[0].mxu0
      %v411 = vadd.f32 0.0, %v410
      %v412 = vpop.f32.mrb[0].mxu0
      %v413 = vadd.f32 0.0, %v412
      %414 = vdwg.mxu0
      %v416 = vsel %vm205, %v310, 0
      %v419 = vsel %vm209, %v308, 0
      %v422 = vsel %vm209, %v309, 0
      %424 = vmatprep.subr.mxu0 %v422
      %425 = vmatpush1.msra.mxu0 %v419
      %426 = vmatprep.subr.mxu0 0.0
      %427 = vmatpush1.msra.mxu0 0.0
      %428 = vmatprep.subr.mxu0 0.0
      %429 = vmatpush1.msra.mxu0 0.0
      %430 = vmatprep.subr.mxu0 0.0
      %431 = vmatpush1.msra.mxu0 0.0
      %432 = vmatprep.subr.mxu0 0.0
      %433 = vmatpush1.msra.mxu0 0.0
      %434 = vmatprep.subr.mxu0 0.0
      %435 = vmatpush1.msra.mxu0 0.0
      %436 = vmatprep.subr.mxu0 0.0
      %437 = vmatpush1.msra.mxu0 0.0
      %438 = vmatprep.subr.mxu0 0.0
      %439 = vmatpush1.msra.mxu0 0.0
      %440 = vmatprep.subr.mxu0 0.0
      %441 = vmatpush1.msra.mxu0 0.0
      %442 = vmatprep.subr.mxu0 0.0
      %443 = vmatpush1.msra.mxu0 0.0
      %444 = vmatprep.subr.mxu0 0.0
      %445 = vmatpush1.msra.mxu0 0.0
      %446 = vmatprep.subr.mxu0 0.0
      %447 = vmatpush1.msra.mxu0 0.0
      %448 = vmatprep.subr.mxu0 0.0
      %449 = vmatpush1.msra.mxu0 0.0
      %450 = vmatprep.subr.mxu0 0.0
      %451 = vmatpush1.msra.mxu0 0.0
      %452 = vmatprep.subr.mxu0 0.0
      %453 = vmatpush1.msra.mxu0 0.0
      %454 = vmatprep.subr.mxu0 0.0
      %455 = vmatpush1.msra.mxu0 0.0
      %456 = vmatprep.subr.mxu0 0.0
      %457 = vmatpush1.msra.mxu0 0.0
      %458 = vmatprep.subr.mxu0 0.0
      %459 = vmatpush1.msra.mxu0 0.0
      %460 = vmatprep.subr.mxu0 0.0
      %461 = vmatpush1.msra.mxu0 0.0
      %462 = vmatprep.subr.mxu0 0.0
      %463 = vmatpush1.msra.mxu0 0.0
      %464 = vmatprep.subr.mxu0 0.0
      %465 = vmatpush1.msra.mxu0 0.0
      %466 = vmatprep.subr.mxu0 0.0
      %467 = vmatpush1.msra.mxu0 0.0
      %468 = vmatprep.subr.mxu0 0.0
      %469 = vmatpush1.msra.mxu0 0.0
      %470 = vmatprep.subr.mxu0 0.0
      %471 = vmatpush1.msra.mxu0 0.0
      %472 = vmatprep.subr.mxu0 0.0
      %473 = vmatpush1.msra.mxu0 0.0
      %474 = vmatprep.subr.mxu0 0.0
      %475 = vmatpush1.msra.mxu0 0.0
      %476 = vmatprep.subr.mxu0 0.0
      %477 = vmatpush1.msra.mxu0 0.0
      %478 = vmatprep.subr.mxu0 0.0
      %479 = vmatpush1.msra.mxu0 0.0
      %480 = vmatprep.subr.mxu0 0.0
      %481 = vmatpush1.msra.mxu0 0.0
      %482 = vmatprep.subr.mxu0 0.0
      %483 = vmatpush1.msra.mxu0 0.0
      %484 = vmatprep.subr.mxu0 0.0
      %485 = vmatpush1.msra.mxu0 0.0
      %486 = vmatprep.subr.mxu0 0.0
      %487 = vmatpush1.msra.mxu0 0.0
      %488 = vmatprep.mubr.f32.mxu0 0.0
      %489 = vmatmul.mubr.f32.gmra.mrb[0].mxu0 %v416
      %v490 = vpop.f32.mrb[0].mxu0
      %v491 = vadd.f32 %v411, %v490
      %v492 = vpop.f32.mrb[0].mxu0
      %v493 = vadd.f32 %v413, %v492
      %494 = vdwg.mxu0
      %495 = vrot.lane.b32.xlu0 %v285, 15
      %v496 = vpop.permute.xlu0 %495
      %497 = vrot.lane.b32.xlu0 %v286, 15
      %v498 = vpop.permute.xlu0 %497
      %vm499 = vcmp.lt.s32.totalorder %v292, 15
      %v500 = vsel %vm499, %v496, %v498
      %v501 = vsel %vm499, %v498, %v496
      %s502 = scalar_lea.vmem %s3, 4
      %v503 = vld [vmem:[%s502] sm:$0x3]
      %v505 = vlaneseq
      %v506 = vshrl.u32 %v505, 7
      %v507 = vsub.s32 0, %v506
      %v508 = vrot.slane %v503, %v507
      %v509 = vlaneseq
      %v510 = vshrl.u32 %v509, 7
      %v511 = vsub.s32 1, %v510
      %v512 = vrot.slane %v503, %v511
      %v515 = vmul.f32 %v501, %v508
      %v516 = vmul.f32 %v500, %v512
      %s517 = scalar_lea.vmem %s2, 8
      %v518 = vld [vmem:[%s517] sm:$0xf]
      %v520 = vsel %vm205, %v518, 0
      %v523 = vsel %vm209, %v515, 0
      %v526 = vsel %vm209, %v516, 0
      %528 = vmatprep.subr.mxu0 %v526
      %529 = vmatpush1.msra.mxu0 %v523
      %530 = vmatprep.subr.mxu0 0.0
      %531 = vmatpush1.msra.mxu0 0.0
      %532 = vmatprep.subr.mxu0 0.0
      %533 = vmatpush1.msra.mxu0 0.0
      %534 = vmatprep.subr.mxu0 0.0
      %535 = vmatpush1.msra.mxu0 0.0
      %536 = vmatprep.subr.mxu0 0.0
      %537 = vmatpush1.msra.mxu0 0.0
      %538 = vmatprep.subr.mxu0 0.0
      %539 = vmatpush1.msra.mxu0 0.0
      %540 = vmatprep.subr.mxu0 0.0
      %541 = vmatpush1.msra.mxu0 0.0
      %542 = vmatprep.subr.mxu0 0.0
      %543 = vmatpush1.msra.mxu0 0.0
      %544 = vmatprep.subr.mxu0 0.0
      %545 = vmatpush1.msra.mxu0 0.0
      %546 = vmatprep.subr.mxu0 0.0
      %547 = vmatpush1.msra.mxu0 0.0
      %548 = vmatprep.subr.mxu0 0.0
      %549 = vmatpush1.msra.mxu0 0.0
      %550 = vmatprep.subr.mxu0 0.0
      %551 = vmatpush1.msra.mxu0 0.0
      %552 = vmatprep.subr.mxu0 0.0
      %553 = vmatpush1.msra.mxu0 0.0
      %554 = vmatprep.subr.mxu0 0.0
      %555 = vmatpush1.msra.mxu0 0.0
      %556 = vmatprep.subr.mxu0 0.0
      %557 = vmatpush1.msra.mxu0 0.0
      %558 = vmatprep.subr.mxu0 0.0
      %559 = vmatpush1.msra.mxu0 0.0
      %560 = vmatprep.subr.mxu0 0.0
      %561 = vmatpush1.msra.mxu0 0.0
      %562 = vmatprep.subr.mxu0 0.0
      %563 = vmatpush1.msra.mxu0 0.0
      %564 = vmatprep.subr.mxu0 0.0
      %565 = vmatpush1.msra.mxu0 0.0
      %566 = vmatprep.subr.mxu0 0.0
      %567 = vmatpush1.msra.mxu0 0.0
      %568 = vmatprep.subr.mxu0 0.0
      %569 = vmatpush1.msra.mxu0 0.0
      %570 = vmatprep.subr.mxu0 0.0
      %571 = vmatpush1.msra.mxu0 0.0
      %572 = vmatprep.subr.mxu0 0.0
      %573 = vmatpush1.msra.mxu0 0.0
      %574 = vmatprep.subr.mxu0 0.0
      %575 = vmatpush1.msra.mxu0 0.0
      %576 = vmatprep.subr.mxu0 0.0
      %577 = vmatpush1.msra.mxu0 0.0
      %578 = vmatprep.subr.mxu0 0.0
      %579 = vmatpush1.msra.mxu0 0.0
      %580 = vmatprep.subr.mxu0 0.0
      %581 = vmatpush1.msra.mxu0 0.0
      %582 = vmatprep.subr.mxu0 0.0
      %583 = vmatpush1.msra.mxu0 0.0
      %584 = vmatprep.subr.mxu0 0.0
      %585 = vmatpush1.msra.mxu0 0.0
      %586 = vmatprep.subr.mxu0 0.0
      %587 = vmatpush1.msra.mxu0 0.0
      %588 = vmatprep.subr.mxu0 0.0
      %589 = vmatpush1.msra.mxu0 0.0
      %590 = vmatprep.subr.mxu0 0.0
      %591 = vmatpush1.msra.mxu0 0.0
      %592 = vmatprep.mubr.f32.mxu0 0.0
      %593 = vmatmul.mubr.f32.gmra.mrb[0].mxu0 %v520
      %v594 = vpop.f32.mrb[0].mxu0
      %v595 = vadd.f32 0.0, %v594
      %v596 = vpop.f32.mrb[0].mxu0
      %v597 = vadd.f32 0.0, %v596
      %598 = vdwg.mxu0
      %v599 = vadd.f32 %v491, %v595
      %v600 = vadd.f32 %v493, %v597
      %601 = vrot.lane.b32.xlu0 %v285, 1
      %v602 = vpop.permute.xlu0 %601
      %603 = vrot.lane.b32.xlu0 %v286, 1
      %v604 = vpop.permute.xlu0 %603
      %vm605 = vcmp.lt.s32.totalorder %v292, 1
      %v606 = vsel %vm605, %v602, %v604
      %v607 = vsel %vm605, %v604, %v602
      %s608 = scalar_lea.vmem %s3, 6
      %v609 = vld [vmem:[%s608] sm:$0x3]
      %v611 = vlaneseq
      %v612 = vshrl.u32 %v611, 7
      %v613 = vsub.s32 0, %v612
      %v614 = vrot.slane %v609, %v613
      %v615 = vlaneseq
      %v616 = vshrl.u32 %v615, 7
      %v617 = vsub.s32 1, %v616
      %v618 = vrot.slane %v609, %v617
      %v621 = vmul.f32 %v607, %v614
      %v622 = vmul.f32 %v606, %v618
      %s623 = scalar_lea.vmem %s2, 12
      %v624 = vld [vmem:[%s623] sm:$0xf]
      %v626 = vsel %vm205, %v624, 0
      %v629 = vsel %vm209, %v621, 0
      %v632 = vsel %vm209, %v622, 0
      %634 = vmatprep.subr.mxu0 %v632
      %635 = vmatpush1.msra.mxu0 %v629
      %636 = vmatprep.subr.mxu0 0.0
      %637 = vmatpush1.msra.mxu0 0.0
      %638 = vmatprep.subr.mxu0 0.0
      %639 = vmatpush1.msra.mxu0 0.0
      %640 = vmatprep.subr.mxu0 0.0
      %641 = vmatpush1.msra.mxu0 0.0
      %642 = vmatprep.subr.mxu0 0.0
      %643 = vmatpush1.msra.mxu0 0.0
      %644 = vmatprep.subr.mxu0 0.0
      %645 = vmatpush1.msra.mxu0 0.0
      %646 = vmatprep.subr.mxu0 0.0
      %647 = vmatpush1.msra.mxu0 0.0
      %648 = vmatprep.subr.mxu0 0.0
      %649 = vmatpush1.msra.mxu0 0.0
      %650 = vmatprep.subr.mxu0 0.0
      %651 = vmatpush1.msra.mxu0 0.0
      %652 = vmatprep.subr.mxu0 0.0
      %653 = vmatpush1.msra.mxu0 0.0
      %654 = vmatprep.subr.mxu0 0.0
      %655 = vmatpush1.msra.mxu0 0.0
      %656 = vmatprep.subr.mxu0 0.0
      %657 = vmatpush1.msra.mxu0 0.0
      %658 = vmatprep.subr.mxu0 0.0
      %659 = vmatpush1.msra.mxu0 0.0
      %660 = vmatprep.subr.mxu0 0.0
      %661 = vmatpush1.msra.mxu0 0.0
      %662 = vmatprep.subr.mxu0 0.0
      %663 = vmatpush1.msra.mxu0 0.0
      %664 = vmatprep.subr.mxu0 0.0
      %665 = vmatpush1.msra.mxu0 0.0
      %666 = vmatprep.subr.mxu0 0.0
      %667 = vmatpush1.msra.mxu0 0.0
      %668 = vmatprep.subr.mxu0 0.0
      %669 = vmatpush1.msra.mxu0 0.0
      %670 = vmatprep.subr.mxu0 0.0
      %671 = vmatpush1.msra.mxu0 0.0
      %672 = vmatprep.subr.mxu0 0.0
      %673 = vmatpush1.msra.mxu0 0.0
      %674 = vmatprep.subr.mxu0 0.0
      %675 = vmatpush1.msra.mxu0 0.0
      %676 = vmatprep.subr.mxu0 0.0
      %677 = vmatpush1.msra.mxu0 0.0
      %678 = vmatprep.subr.mxu0 0.0
      %679 = vmatpush1.msra.mxu0 0.0
      %680 = vmatprep.subr.mxu0 0.0
      %681 = vmatpush1.msra.mxu0 0.0
      %682 = vmatprep.subr.mxu0 0.0
      %683 = vmatpush1.msra.mxu0 0.0
      %684 = vmatprep.subr.mxu0 0.0
      %685 = vmatpush1.msra.mxu0 0.0
      %686 = vmatprep.subr.mxu0 0.0
      %687 = vmatpush1.msra.mxu0 0.0
      %688 = vmatprep.subr.mxu0 0.0
      %689 = vmatpush1.msra.mxu0 0.0
      %690 = vmatprep.subr.mxu0 0.0
      %691 = vmatpush1.msra.mxu0 0.0
      %692 = vmatprep.subr.mxu0 0.0
      %693 = vmatpush1.msra.mxu0 0.0
      %694 = vmatprep.subr.mxu0 0.0
      %695 = vmatpush1.msra.mxu0 0.0
      %696 = vmatprep.subr.mxu0 0.0
      %697 = vmatpush1.msra.mxu0 0.0
      %698 = vmatprep.mubr.f32.mxu0 0.0
      %699 = vmatmul.mubr.f32.gmra.mrb[0].mxu0 %v626
      %v700 = vpop.f32.mrb[0].mxu0
      %v701 = vadd.f32 0.0, %v700
      %v702 = vpop.f32.mrb[0].mxu0
      %v703 = vadd.f32 0.0, %v702
      %704 = vdwg.mxu0
      %v705 = vadd.f32 %v599, %v701
      %v706 = vadd.f32 %v600, %v703
      %s707 = scalar_lea.vmem %s2, 16
      %v708 = vld [vmem:[%s707] sm:$0xf]
      %v710 = vsel %vm205, %v708, 0
      %v713 = vsel %vm209, %v285, 0
      %v716 = vsel %vm209, %v286, 0
      %718 = vmatprep.subr.mxu0 %v716
      %719 = vmatpush1.msra.mxu0 %v713
      %720 = vmatprep.subr.mxu0 0.0
      %721 = vmatpush1.msra.mxu0 0.0
      %722 = vmatprep.subr.mxu0 0.0
      %723 = vmatpush1.msra.mxu0 0.0
      %724 = vmatprep.subr.mxu0 0.0
      %725 = vmatpush1.msra.mxu0 0.0
      %726 = vmatprep.subr.mxu0 0.0
      %727 = vmatpush1.msra.mxu0 0.0
      %728 = vmatprep.subr.mxu0 0.0
      %729 = vmatpush1.msra.mxu0 0.0
      %730 = vmatprep.subr.mxu0 0.0
      %731 = vmatpush1.msra.mxu0 0.0
      %732 = vmatprep.subr.mxu0 0.0
      %733 = vmatpush1.msra.mxu0 0.0
      %734 = vmatprep.subr.mxu0 0.0
      %735 = vmatpush1.msra.mxu0 0.0
      %736 = vmatprep.subr.mxu0 0.0
      %737 = vmatpush1.msra.mxu0 0.0
      %738 = vmatprep.subr.mxu0 0.0
      %739 = vmatpush1.msra.mxu0 0.0
      %740 = vmatprep.subr.mxu0 0.0
      %741 = vmatpush1.msra.mxu0 0.0
      %742 = vmatprep.subr.mxu0 0.0
      %743 = vmatpush1.msra.mxu0 0.0
      %744 = vmatprep.subr.mxu0 0.0
      %745 = vmatpush1.msra.mxu0 0.0
      %746 = vmatprep.subr.mxu0 0.0
      %747 = vmatpush1.msra.mxu0 0.0
      %748 = vmatprep.subr.mxu0 0.0
      %749 = vmatpush1.msra.mxu0 0.0
      %750 = vmatprep.subr.mxu0 0.0
      %751 = vmatpush1.msra.mxu0 0.0
      %752 = vmatprep.subr.mxu0 0.0
      %753 = vmatpush1.msra.mxu0 0.0
      %754 = vmatprep.subr.mxu0 0.0
      %755 = vmatpush1.msra.mxu0 0.0
      %756 = vmatprep.subr.mxu0 0.0
      %757 = vmatpush1.msra.mxu0 0.0
      %758 = vmatprep.subr.mxu0 0.0
      %759 = vmatpush1.msra.mxu0 0.0
      %760 = vmatprep.subr.mxu0 0.0
      %761 = vmatpush1.msra.mxu0 0.0
      %762 = vmatprep.subr.mxu0 0.0
      %763 = vmatpush1.msra.mxu0 0.0
      %764 = vmatprep.subr.mxu0 0.0
      %765 = vmatpush1.msra.mxu0 0.0
      %766 = vmatprep.subr.mxu0 0.0
      %767 = vmatpush1.msra.mxu0 0.0
      %768 = vmatprep.subr.mxu0 0.0
      %769 = vmatpush1.msra.mxu0 0.0
      %770 = vmatprep.subr.mxu0 0.0
      %771 = vmatpush1.msra.mxu0 0.0
      %772 = vmatprep.subr.mxu0 0.0
      %773 = vmatpush1.msra.mxu0 0.0
      %774 = vmatprep.subr.mxu0 0.0
      %775 = vmatpush1.msra.mxu0 0.0
      %776 = vmatprep.subr.mxu0 0.0
      %777 = vmatpush1.msra.mxu0 0.0
      %778 = vmatprep.subr.mxu0 0.0
      %779 = vmatpush1.msra.mxu0 0.0
      %780 = vmatprep.subr.mxu0 0.0
      %781 = vmatpush1.msra.mxu0 0.0
      %782 = vmatprep.mubr.f32.mxu0 0.0
      %783 = vmatmul.mubr.f32.gmra.mrb[0].mxu0 %v710
      %v784 = vpop.f32.mrb[0].mxu0
      %v785 = vadd.f32 0.0, %v784
      %v786 = vpop.f32.mrb[0].mxu0
      %v787 = vadd.f32 0.0, %v786
      %788 = vdwg.mxu0
      %v789 = vadd.f32 %v705, %v785
      %v790 = vadd.f32 %v706, %v787
      %791 = vrot.lane.b32.xlu0 %v285, 127
      %v792 = vpop.permute.xlu0 %791
      %793 = vrot.lane.b32.xlu0 %v286, 127
      %v794 = vpop.permute.xlu0 %793
      %vm795 = vcmp.lt.s32.totalorder %v292, 127
      %v796 = vsel %vm795, %v792, %v794
      %v797 = vsel %vm795, %v794, %v792
      %s798 = scalar_lea.vmem %s3, 10
      %v799 = vld [vmem:[%s798] sm:$0x3]
      %v801 = vlaneseq
      %v802 = vshrl.u32 %v801, 7
      %v803 = vsub.s32 0, %v802
      %v804 = vrot.slane %v799, %v803
      %v805 = vlaneseq
      %v806 = vshrl.u32 %v805, 7
      %v807 = vsub.s32 1, %v806
      %v808 = vrot.slane %v799, %v807
      %v811 = vmul.f32 %v796, %v804
      %v812 = vmul.f32 %v797, %v808
      %s813 = scalar_lea.vmem %s2, 20
      %v814 = vld [vmem:[%s813] sm:$0xf]
      %v816 = vsel %vm205, %v814, 0
      %v819 = vsel %vm209, %v811, 0
      %v822 = vsel %vm209, %v812, 0
      %824 = vmatprep.subr.mxu0 %v822
      %825 = vmatpush1.msra.mxu0 %v819
      %826 = vmatprep.subr.mxu0 0.0
      %827 = vmatpush1.msra.mxu0 0.0
      %828 = vmatprep.subr.mxu0 0.0
      %829 = vmatpush1.msra.mxu0 0.0
      %830 = vmatprep.subr.mxu0 0.0
      %831 = vmatpush1.msra.mxu0 0.0
      %832 = vmatprep.subr.mxu0 0.0
      %833 = vmatpush1.msra.mxu0 0.0
      %834 = vmatprep.subr.mxu0 0.0
      %835 = vmatpush1.msra.mxu0 0.0
      %836 = vmatprep.subr.mxu0 0.0
      %837 = vmatpush1.msra.mxu0 0.0
      %838 = vmatprep.subr.mxu0 0.0
      %839 = vmatpush1.msra.mxu0 0.0
      %840 = vmatprep.subr.mxu0 0.0
      %841 = vmatpush1.msra.mxu0 0.0
      %842 = vmatprep.subr.mxu0 0.0
      %843 = vmatpush1.msra.mxu0 0.0
      %844 = vmatprep.subr.mxu0 0.0
      %845 = vmatpush1.msra.mxu0 0.0
      %846 = vmatprep.subr.mxu0 0.0
      %847 = vmatpush1.msra.mxu0 0.0
      %848 = vmatprep.subr.mxu0 0.0
      %849 = vmatpush1.msra.mxu0 0.0
      %850 = vmatprep.subr.mxu0 0.0
      %851 = vmatpush1.msra.mxu0 0.0
      %852 = vmatprep.subr.mxu0 0.0
      %853 = vmatpush1.msra.mxu0 0.0
      %854 = vmatprep.subr.mxu0 0.0
      %855 = vmatpush1.msra.mxu0 0.0
      %856 = vmatprep.subr.mxu0 0.0
      %857 = vmatpush1.msra.mxu0 0.0
      %858 = vmatprep.subr.mxu0 0.0
      %859 = vmatpush1.msra.mxu0 0.0
      %860 = vmatprep.subr.mxu0 0.0
      %861 = vmatpush1.msra.mxu0 0.0
      %862 = vmatprep.subr.mxu0 0.0
      %863 = vmatpush1.msra.mxu0 0.0
      %864 = vmatprep.subr.mxu0 0.0
      %865 = vmatpush1.msra.mxu0 0.0
      %866 = vmatprep.subr.mxu0 0.0
      %867 = vmatpush1.msra.mxu0 0.0
      %868 = vmatprep.subr.mxu0 0.0
      %869 = vmatpush1.msra.mxu0 0.0
      %870 = vmatprep.subr.mxu0 0.0
      %871 = vmatpush1.msra.mxu0 0.0
      %872 = vmatprep.subr.mxu0 0.0
      %873 = vmatpush1.msra.mxu0 0.0
      %874 = vmatprep.subr.mxu0 0.0
      %875 = vmatpush1.msra.mxu0 0.0
      %876 = vmatprep.subr.mxu0 0.0
      %877 = vmatpush1.msra.mxu0 0.0
      %878 = vmatprep.subr.mxu0 0.0
      %879 = vmatpush1.msra.mxu0 0.0
      %880 = vmatprep.subr.mxu0 0.0
      %881 = vmatpush1.msra.mxu0 0.0
      %882 = vmatprep.subr.mxu0 0.0
      %883 = vmatpush1.msra.mxu0 0.0
      %884 = vmatprep.subr.mxu0 0.0
      %885 = vmatpush1.msra.mxu0 0.0
      %886 = vmatprep.subr.mxu0 0.0
      %887 = vmatpush1.msra.mxu0 0.0
      %888 = vmatprep.mubr.f32.mxu0 0.0
      %889 = vmatmul.mubr.f32.gmra.mrb[0].mxu0 %v816
      %v890 = vpop.f32.mrb[0].mxu0
      %v891 = vadd.f32 0.0, %v890
      %v892 = vpop.f32.mrb[0].mxu0
      %v893 = vadd.f32 0.0, %v892
      %894 = vdwg.mxu0
      %v895 = vadd.f32 %v789, %v891
      %v896 = vadd.f32 %v790, %v893
      %897 = vrot.lane.b32.xlu0 %v285, 113
      %v898 = vpop.permute.xlu0 %897
      %899 = vrot.lane.b32.xlu0 %v286, 113
      %v900 = vpop.permute.xlu0 %899
      %vm901 = vcmp.lt.s32.totalorder %v292, 113
      %v902 = vsel %vm901, %v898, %v900
      %v903 = vsel %vm901, %v900, %v898
      %s904 = scalar_lea.vmem %s3, 12
      %v905 = vld [vmem:[%s904] sm:$0x3]
      %v907 = vlaneseq
      %v908 = vshrl.u32 %v907, 7
      %v909 = vsub.s32 0, %v908
      %v910 = vrot.slane %v905, %v909
      %v911 = vlaneseq
      %v912 = vshrl.u32 %v911, 7
      %v913 = vsub.s32 1, %v912
      %v914 = vrot.slane %v905, %v913
      %v917 = vmul.f32 %v902, %v910
      %v918 = vmul.f32 %v903, %v914
      %s919 = scalar_lea.vmem %s2, 24
      %v920 = vld [vmem:[%s919] sm:$0xf]
      %v922 = vsel %vm205, %v920, 0
      %v925 = vsel %vm209, %v917, 0
      %v928 = vsel %vm209, %v918, 0
      %930 = vmatprep.subr.mxu0 %v928
      %931 = vmatpush1.msra.mxu0 %v925
      %932 = vmatprep.subr.mxu0 0.0
      %933 = vmatpush1.msra.mxu0 0.0
      %934 = vmatprep.subr.mxu0 0.0
      %935 = vmatpush1.msra.mxu0 0.0
      %936 = vmatprep.subr.mxu0 0.0
      %937 = vmatpush1.msra.mxu0 0.0
      %938 = vmatprep.subr.mxu0 0.0
      %939 = vmatpush1.msra.mxu0 0.0
      %940 = vmatprep.subr.mxu0 0.0
      %941 = vmatpush1.msra.mxu0 0.0
      %942 = vmatprep.subr.mxu0 0.0
      %943 = vmatpush1.msra.mxu0 0.0
      %944 = vmatprep.subr.mxu0 0.0
      %945 = vmatpush1.msra.mxu0 0.0
      %946 = vmatprep.subr.mxu0 0.0
      %947 = vmatpush1.msra.mxu0 0.0
      %948 = vmatprep.subr.mxu0 0.0
      %949 = vmatpush1.msra.mxu0 0.0
      %950 = vmatprep.subr.mxu0 0.0
      %951 = vmatpush1.msra.mxu0 0.0
      %952 = vmatprep.subr.mxu0 0.0
      %953 = vmatpush1.msra.mxu0 0.0
      %954 = vmatprep.subr.mxu0 0.0
      %955 = vmatpush1.msra.mxu0 0.0
      %956 = vmatprep.subr.mxu0 0.0
      %957 = vmatpush1.msra.mxu0 0.0
      %958 = vmatprep.subr.mxu0 0.0
      %959 = vmatpush1.msra.mxu0 0.0
      %960 = vmatprep.subr.mxu0 0.0
      %961 = vmatpush1.msra.mxu0 0.0
      %962 = vmatprep.subr.mxu0 0.0
      %963 = vmatpush1.msra.mxu0 0.0
      %964 = vmatprep.subr.mxu0 0.0
      %965 = vmatpush1.msra.mxu0 0.0
      %966 = vmatprep.subr.mxu0 0.0
      %967 = vmatpush1.msra.mxu0 0.0
      %968 = vmatprep.subr.mxu0 0.0
      %969 = vmatpush1.msra.mxu0 0.0
      %970 = vmatprep.subr.mxu0 0.0
      %971 = vmatpush1.msra.mxu0 0.0
      %972 = vmatprep.subr.mxu0 0.0
      %973 = vmatpush1.msra.mxu0 0.0
      %974 = vmatprep.subr.mxu0 0.0
      %975 = vmatpush1.msra.mxu0 0.0
      %976 = vmatprep.subr.mxu0 0.0
      %977 = vmatpush1.msra.mxu0 0.0
      %978 = vmatprep.subr.mxu0 0.0
      %979 = vmatpush1.msra.mxu0 0.0
      %980 = vmatprep.subr.mxu0 0.0
      %981 = vmatpush1.msra.mxu0 0.0
      %982 = vmatprep.subr.mxu0 0.0
      %983 = vmatpush1.msra.mxu0 0.0
      %984 = vmatprep.subr.mxu0 0.0
      %985 = vmatpush1.msra.mxu0 0.0
      %986 = vmatprep.subr.mxu0 0.0
      %987 = vmatpush1.msra.mxu0 0.0
      %988 = vmatprep.subr.mxu0 0.0
      %989 = vmatpush1.msra.mxu0 0.0
      %990 = vmatprep.subr.mxu0 0.0
      %991 = vmatpush1.msra.mxu0 0.0
      %992 = vmatprep.subr.mxu0 0.0
      %993 = vmatpush1.msra.mxu0 0.0
      %994 = vmatprep.mubr.f32.mxu0 0.0
      %995 = vmatmul.mubr.f32.gmra.mrb[0].mxu0 %v922
      %v996 = vpop.f32.mrb[0].mxu0
      %v997 = vadd.f32 0.0, %v996
      %v998 = vpop.f32.mrb[0].mxu0
      %v999 = vadd.f32 0.0, %v998
      %1000 = vdwg.mxu0
      %v1001 = vadd.f32 %v895, %v997
      %v1002 = vadd.f32 %v896, %v999
      %1003 = vrot.lane.b32.xlu0 %v285, 112
      %v1004 = vpop.permute.xlu0 %1003
      %1005 = vrot.lane.b32.xlu0 %v286, 112
      %v1006 = vpop.permute.xlu0 %1005
      %vm1007 = vcmp.lt.s32.totalorder %v292, 112
      %v1008 = vsel %vm1007, %v1004, %v1006
      %v1009 = vsel %vm1007, %v1006, %v1004
      %s1010 = scalar_lea.vmem %s3, 14
      %v1011 = vld [vmem:[%s1010] sm:$0x3]
      %v1013 = vlaneseq
      %v1014 = vshrl.u32 %v1013, 7
      %v1015 = vsub.s32 0, %v1014
      %v1016 = vrot.slane %v1011, %v1015
      %v1017 = vlaneseq
      %v1018 = vshrl.u32 %v1017, 7
      %v1019 = vsub.s32 1, %v1018
      %v1020 = vrot.slane %v1011, %v1019
      %v1023 = vmul.f32 %v1008, %v1016
      %v1024 = vmul.f32 %v1009, %v1020
      %s1025 = scalar_lea.vmem %s2, 28
      %v1026 = vld [vmem:[%s1025] sm:$0xf]
      %v1028 = vsel %vm205, %v1026, 0
      %v1031 = vsel %vm209, %v1023, 0
      %v1034 = vsel %vm209, %v1024, 0
      %1036 = vmatprep.subr.mxu0 %v1034
      %1037 = vmatpush1.msra.mxu0 %v1031
      %1038 = vmatprep.subr.mxu0 0.0
      %1039 = vmatpush1.msra.mxu0 0.0
      %1040 = vmatprep.subr.mxu0 0.0
      %1041 = vmatpush1.msra.mxu0 0.0
      %1042 = vmatprep.subr.mxu0 0.0
      %1043 = vmatpush1.msra.mxu0 0.0
      %1044 = vmatprep.subr.mxu0 0.0
      %1045 = vmatpush1.msra.mxu0 0.0
      %1046 = vmatprep.subr.mxu0 0.0
      %1047 = vmatpush1.msra.mxu0 0.0
      %1048 = vmatprep.subr.mxu0 0.0
      %1049 = vmatpush1.msra.mxu0 0.0
      %1050 = vmatprep.subr.mxu0 0.0
      %1051 = vmatpush1.msra.mxu0 0.0
      %1052 = vmatprep.subr.mxu0 0.0
      %1053 = vmatpush1.msra.mxu0 0.0
      %1054 = vmatprep.subr.mxu0 0.0
      %1055 = vmatpush1.msra.mxu0 0.0
      %1056 = vmatprep.subr.mxu0 0.0
      %1057 = vmatpush1.msra.mxu0 0.0
      %1058 = vmatprep.subr.mxu0 0.0
      %1059 = vmatpush1.msra.mxu0 0.0
      %1060 = vmatprep.subr.mxu0 0.0
      %1061 = vmatpush1.msra.mxu0 0.0
      %1062 = vmatprep.subr.mxu0 0.0
      %1063 = vmatpush1.msra.mxu0 0.0
      %1064 = vmatprep.subr.mxu0 0.0
      %1065 = vmatpush1.msra.mxu0 0.0
      %1066 = vmatprep.subr.mxu0 0.0
      %1067 = vmatpush1.msra.mxu0 0.0
      %1068 = vmatprep.subr.mxu0 0.0
      %1069 = vmatpush1.msra.mxu0 0.0
      %1070 = vmatprep.subr.mxu0 0.0
      %1071 = vmatpush1.msra.mxu0 0.0
      %1072 = vmatprep.subr.mxu0 0.0
      %1073 = vmatpush1.msra.mxu0 0.0
      %1074 = vmatprep.subr.mxu0 0.0
      %1075 = vmatpush1.msra.mxu0 0.0
      %1076 = vmatprep.subr.mxu0 0.0
      %1077 = vmatpush1.msra.mxu0 0.0
      %1078 = vmatprep.subr.mxu0 0.0
      %1079 = vmatpush1.msra.mxu0 0.0
      %1080 = vmatprep.subr.mxu0 0.0
      %1081 = vmatpush1.msra.mxu0 0.0
      %1082 = vmatprep.subr.mxu0 0.0
      %1083 = vmatpush1.msra.mxu0 0.0
      %1084 = vmatprep.subr.mxu0 0.0
      %1085 = vmatpush1.msra.mxu0 0.0
      %1086 = vmatprep.subr.mxu0 0.0
      %1087 = vmatpush1.msra.mxu0 0.0
      %1088 = vmatprep.subr.mxu0 0.0
      %1089 = vmatpush1.msra.mxu0 0.0
      %1090 = vmatprep.subr.mxu0 0.0
      %1091 = vmatpush1.msra.mxu0 0.0
      %1092 = vmatprep.subr.mxu0 0.0
      %1093 = vmatpush1.msra.mxu0 0.0
      %1094 = vmatprep.subr.mxu0 0.0
      %1095 = vmatpush1.msra.mxu0 0.0
      %1096 = vmatprep.subr.mxu0 0.0
      %1097 = vmatpush1.msra.mxu0 0.0
      %1098 = vmatprep.subr.mxu0 0.0
      %1099 = vmatpush1.msra.mxu0 0.0
      %1100 = vmatprep.mubr.f32.mxu0 0.0
      %1101 = vmatmul.mubr.f32.gmra.mrb[0].mxu0 %v1028
      %v1102 = vpop.f32.mrb[0].mxu0
      %v1103 = vadd.f32 0.0, %v1102
      %v1104 = vpop.f32.mrb[0].mxu0
      %v1105 = vadd.f32 0.0, %v1104
      %1106 = vdwg.mxu0
      %v1107 = vadd.f32 %v1001, %v1103
      %v1108 = vadd.f32 %v1002, %v1105
      %1109 = vrot.lane.b32.xlu0 %v285, 111
      %v1110 = vpop.permute.xlu0 %1109
      %1111 = vrot.lane.b32.xlu0 %v286, 111
      %v1112 = vpop.permute.xlu0 %1111
      %vm1113 = vcmp.lt.s32.totalorder %v292, 111
      %v1114 = vsel %vm1113, %v1110, %v1112
      %v1115 = vsel %vm1113, %v1112, %v1110
      %s1116 = scalar_lea.vmem %s3, 16
      %v1117 = vld [vmem:[%s1116] sm:$0x3]
      %v1119 = vlaneseq
      %v1120 = vshrl.u32 %v1119, 7
      %v1121 = vsub.s32 0, %v1120
      %v1122 = vrot.slane %v1117, %v1121
      %v1123 = vlaneseq
      %v1124 = vshrl.u32 %v1123, 7
      %v1125 = vsub.s32 1, %v1124
      %v1126 = vrot.slane %v1117, %v1125
      %v1129 = vmul.f32 %v1114, %v1122
      %v1130 = vmul.f32 %v1115, %v1126
      %s1131 = scalar_lea.vmem %s2, 32
      %v1132 = vld [vmem:[%s1131] sm:$0xf]
      %v1134 = vsel %vm205, %v1132, 0
      %v1137 = vsel %vm209, %v1129, 0
      %v1140 = vsel %vm209, %v1130, 0
      %1142 = vmatprep.subr.mxu0 %v1140
      %1143 = vmatpush1.msra.mxu0 %v1137
      %1144 = vmatprep.subr.mxu0 0.0
      %1145 = vmatpush1.msra.mxu0 0.0
      %1146 = vmatprep.subr.mxu0 0.0
      %1147 = vmatpush1.msra.mxu0 0.0
      %1148 = vmatprep.subr.mxu0 0.0
      %1149 = vmatpush1.msra.mxu0 0.0
      %1150 = vmatprep.subr.mxu0 0.0
      %1151 = vmatpush1.msra.mxu0 0.0
      %1152 = vmatprep.subr.mxu0 0.0
      %1153 = vmatpush1.msra.mxu0 0.0
      %1154 = vmatprep.subr.mxu0 0.0
      %1155 = vmatpush1.msra.mxu0 0.0
      %1156 = vmatprep.subr.mxu0 0.0
      %1157 = vmatpush1.msra.mxu0 0.0
      %1158 = vmatprep.subr.mxu0 0.0
      %1159 = vmatpush1.msra.mxu0 0.0
      %1160 = vmatprep.subr.mxu0 0.0
      %1161 = vmatpush1.msra.mxu0 0.0
      %1162 = vmatprep.subr.mxu0 0.0
      %1163 = vmatpush1.msra.mxu0 0.0
      %1164 = vmatprep.subr.mxu0 0.0
      %1165 = vmatpush1.msra.mxu0 0.0
      %1166 = vmatprep.subr.mxu0 0.0
      %1167 = vmatpush1.msra.mxu0 0.0
      %1168 = vmatprep.subr.mxu0 0.0
      %1169 = vmatpush1.msra.mxu0 0.0
      %1170 = vmatprep.subr.mxu0 0.0
      %1171 = vmatpush1.msra.mxu0 0.0
      %1172 = vmatprep.subr.mxu0 0.0
      %1173 = vmatpush1.msra.mxu0 0.0
      %1174 = vmatprep.subr.mxu0 0.0
      %1175 = vmatpush1.msra.mxu0 0.0
      %1176 = vmatprep.subr.mxu0 0.0
      %1177 = vmatpush1.msra.mxu0 0.0
      %1178 = vmatprep.subr.mxu0 0.0
      %1179 = vmatpush1.msra.mxu0 0.0
      %1180 = vmatprep.subr.mxu0 0.0
      %1181 = vmatpush1.msra.mxu0 0.0
      %1182 = vmatprep.subr.mxu0 0.0
      %1183 = vmatpush1.msra.mxu0 0.0
      %1184 = vmatprep.subr.mxu0 0.0
      %1185 = vmatpush1.msra.mxu0 0.0
      %1186 = vmatprep.subr.mxu0 0.0
      %1187 = vmatpush1.msra.mxu0 0.0
      %1188 = vmatprep.subr.mxu0 0.0
      %1189 = vmatpush1.msra.mxu0 0.0
      %1190 = vmatprep.subr.mxu0 0.0
      %1191 = vmatpush1.msra.mxu0 0.0
      %1192 = vmatprep.subr.mxu0 0.0
      %1193 = vmatpush1.msra.mxu0 0.0
      %1194 = vmatprep.subr.mxu0 0.0
      %1195 = vmatpush1.msra.mxu0 0.0
      %1196 = vmatprep.subr.mxu0 0.0
      %1197 = vmatpush1.msra.mxu0 0.0
      %1198 = vmatprep.subr.mxu0 0.0
      %1199 = vmatpush1.msra.mxu0 0.0
      %1200 = vmatprep.subr.mxu0 0.0
      %1201 = vmatpush1.msra.mxu0 0.0
      %1202 = vmatprep.subr.mxu0 0.0
      %1203 = vmatpush1.msra.mxu0 0.0
      %1204 = vmatprep.subr.mxu0 0.0
      %1205 = vmatpush1.msra.mxu0 0.0
      %1206 = vmatprep.mubr.f32.mxu0 0.0
      %1207 = vmatmul.mubr.f32.gmra.mrb[0].mxu0 %v1134
      %v1208 = vpop.f32.mrb[0].mxu0
      %v1209 = vadd.f32 0.0, %v1208
      %v1210 = vpop.f32.mrb[0].mxu0
      %v1211 = vadd.f32 0.0, %v1210
      %1212 = vdwg.mxu0
      %v1213 = vadd.f32 %v1107, %v1209
      %v1214 = vadd.f32 %v1108, %v1211
      %v1215 = vmax.f32 %v1213, 0.0
      %v1216 = vmax.f32 %v1214, 0.0
      %v1218 = vadd.f32 %v1215, %v201
      %v1219 = vadd.f32 %v1216, %v204
      %v1220 = vmax.f32 %v1218, 0.0
      %v1221 = vmax.f32 %v1219, 0.0
      %v1224 = vcombine.low %v1220, %v1221
      %1226 = vst [vmem:[%s199] sm:$0xff] %v1224
      %s1227 = smul.u32 2, %s15
      %p1228 = scmp.lt.s32.totalorder %s1227, 3
      %s1229 = scalar_select %p1228, %s1227, 3
      %s1230 = smul.addr %s1229, 4
      %s1231 = scalar_lea.vmem %s4, %s1230
      // Predicated region
      $region37: #{residual_block.1} parent=35 // pred_check
        %p1232 = pneg %p122
      $region38: #{residual_block.1} parent=35 // pred_check_branch
        %1234 = sbr.rel (%p1232) target = $region40
      $region39: #{residual_block.1} parent=35 // pred_region
        %s1235 = smul.u32 2, %s15
      $region40: #{residual_block.1} parent=35 // pred_fallthru
        _
    $region36: #{residual_block.1} parent=5 // pred_fallthru
      _
    %p1236 = scmp.le.s32.totalorder 2, %s10
    // Predicated region
    $region41: #{residual_block.1} parent=5 // pred_check
      %p1237 = pneg %p1236
    $region42: #{residual_block.1} parent=5 // pred_check_branch
      %1239 = sbr.rel (%p1237) target = $region44
    $region43: #{residual_block.1} parent=5 // pred_region
      %s1240 = ssub.s32 %s10, 2
      // Predicated region
      $region45: #{residual_block.1} parent=43 // pred_check
        %p1241 = pneg %p128
      $region46: #{residual_block.1} parent=43 // pred_check_branch
        %1243 = sbr.rel (%p1241) target = $region48
      $region47: #{residual_block.1} parent=43 // pred_region
        %s1244 = smul.u32 2, %s16
        %p1245 = scmp.lt.s32.totalorder %s1244, 3
        %s1246 = scalar_select %p1245, %s1244, 3
        %s1247 = smul.addr %s1246, 4
        %s1248 = scalar_lea.vmem %s4, %s1247
      $region48: #{residual_block.1} parent=43 // pred_fallthru
        _
    $region44: #{residual_block.1} parent=5 // pred_fallthru
      _
  $region6: #{residual_block.1} parent=0 // loop_footer
    %s14 = sadd.s32 1, %s10
  $region7: #{residual_block.1} parent=0 // loop_footer_branch
    %9 = sbr.rel target = $region3
  $region8: #{residual_block.1} parent=0 // loop_exit
    _

</llo_original>
